<compile_context>
chip_gen: v6e
topology: v6e:2x2x1
jax: 0.10.0
libtpu: 0.0.40
codegen_flags: <defaults>
</compile_context>

<pallas_src>
import jax
import jax.numpy as jnp
from jax.experimental import pallas as pl
from jax.experimental.pallas import tpu as pltpu

MARGIN = 0.1  # cfg.α — deterministic synthetic config value


def _round_up(x: int, m: int) -> int:
    return ((x + m - 1) // m) * m


def _vmem_physical_bytes() -> int:
    try:
        info = pltpu.get_tpu_info()
        cap = getattr(info, "vmem_capacity_bytes", None)
        if cap:
            return int(cap)
    except Exception:
        pass
    return 64 * 1024 * 1024  # conservative: v7x per-core VMEM


def _vmem_estimate_bytes(tn: int, d: int, c_pad: int, feat_itemsize: int) -> int:
    feat_bufs = 2 * 2 * tn * d * feat_itemsize      # 2 feature inputs x double buffer
    label_bufs = 2 * tn * 4                         # label row tile x double buffer
    out_bufs = 2 * c_pad * d * 4                    # resident accumulator block
    temps = c_pad * tn * 4 + 3 * tn * d * 4         # one-hot + normalized/diff temps
    return feat_bufs + label_bufs + out_bufs + temps + (1 << 20)


def _choose_row_tile(n_rows: int, d: int, c_pad: int, feat_itemsize: int,
                     num_row_shards: int, target_feature_bytes: int,
                     vmem_budget: int) -> int:
    rows_per_shard = -(-n_rows // num_row_shards)
    max_tn = _round_up(rows_per_shard, 128)
    tn = min(_round_up(max(target_feature_bytes // (feat_itemsize * d), 1), 128), max_tn)
    while tn > 128 and _vmem_estimate_bytes(tn, d, c_pad, feat_itemsize) > vmem_budget:
        tn = max(128, _round_up(tn // 2, 128))
    return tn


def _per_class_diff_sum_kernel(labels_ref, f1_ref, f2_ref, out_ref):
    """Accumulates per-class sums of (normalize(f1) - normalize(f2)) row tiles."""
    k = pl.program_id(1)  # reduction step within this row shard

    @pl.when(k == 0)
    def _init():
        out_ref[...] = jnp.zeros_like(out_ref)

    f1 = f1_ref[...].astype(jnp.float32)            # (tn, D)
    f2 = f2_ref[...].astype(jnp.float32)            # (tn, D)

    # L2 row normalization via rsqrt (EUP); clamp so zero / padded rows give d == 0.
    # (PyTorch F-style normalize clamps the norm itself; differs only for ~0 rows.)
    inv1 = jax.lax.rsqrt(jnp.maximum(jnp.sum(f1 * f1, axis=1, keepdims=True), 1e-12))
    inv2 = jax.lax.rsqrt(jnp.maximum(jnp.sum(f2 * f2, axis=1, keepdims=True), 1e-12))
    d = f1 * inv1 - f2 * inv2                       # (tn, D) normalized-view difference

    labels = labels_ref[...]                        # (1, tn) int32 (-1 = padding row)
    c_pad = out_ref.shape[0]
    tn = labels.shape[1]
    class_ids = jax.lax.broadcasted_iota(jnp.int32, (c_pad, tn), 0)
    oh = (class_ids == labels).astype(jnp.float32)  # (c_pad, tn); -1 never matches

    # Single MXU matmul accumulates per-class sums of d into the resident output block.
    out_ref[...] += jnp.dot(oh, d, preferred_element_type=jnp.float32)


def cluster_loss_two_view(feat1, feat2, label1, num_classes: int, *,
                          margin: float = MARGIN,
                          num_row_shards: int = 1,
                          block_rows: int | None = None,
                          feature_dtype=None,
                          target_feature_bytes: int = 2 << 20):
    """feat1, feat2: (N, D) float; label1: (N,) int; num_classes: static upper bound.

    num_row_shards=2 maps rows onto both v7x TensorCores (leading "parallel" axis).
    feature_dtype=jnp.bfloat16 streams features at half the HBM traffic.
    Returns the scalar cluster loss (f32).
    """
    N, D = feat1.shape
    c_pad = max(8, _round_up(num_classes, 8))       # sublane-aligned class count

    if feature_dtype is not None:
        feat1 = feat1.astype(feature_dtype)
        feat2 = feat2.astype(feature_dtype)
    feat_itemsize = jnp.dtype(feat1.dtype).itemsize

    physical_vmem = _vmem_physical_bytes()
    vmem_budget = min(int(0.70 * physical_vmem), 48 << 20)

    if block_rows is None:
        tn = _choose_row_tile(N, D, c_pad, feat_itemsize, num_row_shards,
                              target_feature_bytes, vmem_budget)
    else:
        tn = _round_up(int(block_rows), 128)

    rows_per_shard = -(-N // num_row_shards)
    tn = min(tn, _round_up(rows_per_shard, 128))
    steps = -(-rows_per_shard // tn)                # reduction steps per shard
    n_pad = num_row_shards * steps * tn

    if n_pad != N:
        pad = n_pad - N
        feat1 = jnp.pad(feat1, ((0, pad), (0, 0)))
        feat2 = jnp.pad(feat2, ((0, pad), (0, 0)))
        label_padded = jnp.pad(label1.astype(jnp.int32), ((0, pad),),
                               constant_values=-1)
    else:
        label_padded = label1.astype(jnp.int32)
    labels_row = label_padded.reshape(1, n_pad)

    vmem_limit = int(min(0.90 * physical_vmem,
                         max(2 * _vmem_estimate_bytes(tn, D, c_pad, feat_itemsize),
                             32 << 20)))

    partial = pl.pallas_call(
        _per_class_diff_sum_kernel,
        out_shape=jax.ShapeDtypeStruct((num_row_shards, c_pad, D), jnp.float32),
        grid_spec=pltpu.PrefetchScalarGridSpec(
            num_scalar_prefetch=0,
            grid=(num_row_shards, steps),
            in_specs=[
                pl.BlockSpec((1, tn), lambda s, k: (0, s * steps + k)),   # label tile
                pl.BlockSpec((tn, D), lambda s, k: (s * steps + k, 0)),   # feat1 tile
                pl.BlockSpec((tn, D), lambda s, k: (s * steps + k, 0)),   # feat2 tile
            ],
            out_specs=pl.BlockSpec((None, c_pad, D), lambda s, k: (s, 0, 0)),
        ),
        compiler_params=pltpu.CompilerParams(
            dimension_semantics=("parallel", "arbitrary"),   # shards || , N reduction
            vmem_limit_bytes=vmem_limit,
        ),
    )(labels_row, feat1, feat2)

    # Tiny JAX epilogue on (C_pad, D): counts, class means, MSE-sum distance, hinge.
    class_sum = jnp.sum(partial, axis=0)                                     # (c_pad, D)
    counts = jnp.zeros((c_pad,), jnp.float32).at[label1.astype(jnp.int32)].add(1.0)
    inv_c = 1.0 / jnp.maximum(counts, 1.0)
    # ||c1 - c2||^2 = ||sum_members (f1n - f2n)||^2 / count^2
    dist = jnp.sum(class_sum * class_sum, axis=1) * inv_c * inv_c
    hinged = jnp.where(counts > 0.0, jnp.maximum(dist - float(margin), 0.0), 0.0)
    return jnp.sum(hinged)


def _reference(feat1, feat2, label1, num_classes, margin):
    # Pure-JAX mirror of the PyTorch forward (eager, for the sanity check).
    def normalize(x):
        return x / jnp.sqrt(jnp.sum(x * x, axis=1, keepdims=True))

    f1 = normalize(feat1)
    f2 = normalize(feat2)
    total = jnp.float32(0.0)
    for lab in range(num_classes):
        mask = label1 == lab
        cnt = jnp.sum(mask)
        if int(cnt) == 0:            # label.unique() only iterates present classes
            continue
        c1 = jnp.sum(jnp.where(mask[:, None], f1, 0.0), axis=0) / cnt
        c2 = jnp.sum(jnp.where(mask[:, None], f2, 0.0), axis=0) / cnt
        d = jnp.sum((c1 - c2) ** 2)
        total = total + jnp.maximum(d - margin, 0.0)
    return total


if __name__ == "__main__":
    key = jax.random.PRNGKey(0)
    k1, k2, k3 = jax.random.split(key, 3)

    N, D, C = 192, 32, 16
    feat1 = jax.random.normal(k1, (N, D), dtype=jnp.float32)
    feat2 = jax.random.normal(k2, (N, D), dtype=jnp.float32)
    label1 = jax.random.randint(k3, (N,), 0, C, dtype=jnp.int32)

    ref = _reference(feat1, feat2, label1, C, MARGIN)

    # 1) Adaptive tile (single large step here), f32 streaming.
    loss = cluster_loss_two_view(feat1, feat2, label1, num_classes=C)
    jax.block_until_ready(loss)
    assert jnp.allclose(loss, ref, rtol=1e-4, atol=1e-5), (float(loss), float(ref))

    # 2) Forced 128-row tile -> exercises the multi-step "arbitrary" reduction path.
    loss_multi = cluster_loss_two_view(feat1, feat2, label1, num_classes=C,
                                       block_rows=128)
    jax.block_until_ready(loss_multi)
    assert jnp.allclose(loss_multi, ref, rtol=1e-4, atol=1e-5), (
        float(loss_multi), float(ref))

    # 3) Two row shards (v7x megacore layout; harmlessly serializes on 1-TC chips).
    loss_2c = cluster_loss_two_view(feat1, feat2, label1, num_classes=C,
                                    num_row_shards=2, block_rows=128)
    jax.block_until_ready(loss_2c)
    assert jnp.allclose(loss_2c, ref, rtol=1e-4, atol=1e-5), (
        float(loss_2c), float(ref))

    # 4) bf16 feature streaming (halved HBM traffic; input-quantization error only).
    loss_bf16 = cluster_loss_two_view(feat1, feat2, label1, num_classes=C,
                                      feature_dtype=jnp.bfloat16)
    jax.block_until_ready(loss_bf16)
    assert jnp.allclose(loss_bf16, ref, rtol=1e-1, atol=5e-2), (
        float(loss_bf16), float(ref))

    print("KERNEL_OK")
</pallas_src>

<mosaic_0001>
module attributes {stable_mosaic.version = 11 : i64} {
  func.func @_per_class_diff_sum_kernel(%arg0: i32, %arg1: i32, %arg2: memref<1x256xi32, #tpu.memory_space<vmem>>, %arg3: memref<256x32xf32, #tpu.memory_space<vmem>>, %arg4: memref<256x32xf32, #tpu.memory_space<vmem>>, %arg5: memref<1x16x32xf32, #tpu.memory_space<vmem>>) attributes {dimension_semantics = [#tpu.dimension_semantics<parallel>, #tpu.dimension_semantics<arbitrary>], iteration_bounds = array<i64: 1, 1>, scalar_prefetch = 0 : i64, scratch_operands = 0 : i64, tpu.core_type = #tpu.core_type<tc>, window_params = [{transform_indices = @transform_0, window_bounds = array<i64: 1, 256>}, {transform_indices = @transform_1, window_bounds = array<i64: 256, 32>}, {transform_indices = @transform_2, window_bounds = array<i64: 256, 32>}, {transform_indices = @transform_3, window_bounds = array<i64: 1, 16, 32>}]} {
    %c0_i32 = arith.constant 0 : i32
    %0 = arith.cmpi eq, %arg1, %c0_i32 : i32
    %1 = arith.extui %0 : i1 to i32
    %c0_i32_0 = arith.constant 0 : i32
    %2 = arith.cmpi ne, %1, %c0_i32_0 : i32
    scf.if %2 {
      %cst_16 = arith.constant 0.000000e+00 : f32
      %35 = vector.broadcast %cst_16 : f32 to vector<16x32xf32>
      %c0_17 = arith.constant 0 : index
      %c0_18 = arith.constant 0 : index
      %c0_19 = arith.constant 0 : index
      %36 = vector.load %arg5[%c0_17, %c0_18, %c0_19] : memref<1x16x32xf32, #tpu.memory_space<vmem>>, vector<1x16x32xf32>
      %37 = vector.shape_cast %36 : vector<1x16x32xf32> to vector<16x32xf32>
      %38 = vector.shape_cast %35 : vector<16x32xf32> to vector<1x16x32xf32>
      tpu.vector_store %arg5[%c0_17, %c0_18, %c0_19], %38 {strides = array<i32>} : memref<1x16x32xf32, #tpu.memory_space<vmem>>, vector<1x16x32xf32>,
    } else {
    }
    %c0 = arith.constant 0 : index
    %c0_1 = arith.constant 0 : index
    %3 = vector.load %arg3[%c0, %c0_1] : memref<256x32xf32, #tpu.memory_space<vmem>>, vector<256x32xf32>
    %c0_2 = arith.constant 0 : index
    %c0_3 = arith.constant 0 : index
    %4 = vector.load %arg4[%c0_2, %c0_3] : memref<256x32xf32, #tpu.memory_space<vmem>>, vector<256x32xf32>
    %5 = arith.mulf %3, %3 : vector<256x32xf32>
    %cst = arith.constant dense<0.000000e+00> : vector<256xf32>
    %6 = vector.multi_reduction <add>, %5, %cst [1] : vector<256x32xf32> to vector<256xf32>
    %7 = vector.shape_cast %6 : vector<256xf32> to vector<256x1xf32>
    %cst_4 = arith.constant 9.99999996E-13 : f32
    %8 = vector.broadcast %cst_4 : f32 to vector<256x1xf32>
    %9 = arith.maximumf %7, %8 : vector<256x1xf32>
    %10 = math.rsqrt %9 : vector<256x1xf32>
    %11 = arith.mulf %4, %4 : vector<256x32xf32>
    %cst_5 = arith.constant dense<0.000000e+00> : vector<256xf32>
    %12 = vector.multi_reduction <add>, %11, %cst_5 [1] : vector<256x32xf32> to vector<256xf32>
    %13 = vector.shape_cast %12 : vector<256xf32> to vector<256x1xf32>
    %cst_6 = arith.constant 9.99999996E-13 : f32
    %14 = vector.broadcast %cst_6 : f32 to vector<256x1xf32>
    %15 = arith.maximumf %13, %14 : vector<256x1xf32>
    %16 = math.rsqrt %15 : vector<256x1xf32>
    %17 = vector.broadcast %10 : vector<256x1xf32> to vector<256x32xf32>
    %18 = arith.mulf %3, %17 : vector<256x32xf32>
    %19 = vector.broadcast %16 : vector<256x1xf32> to vector<256x32xf32>
    %20 = arith.mulf %4, %19 : vector<256x32xf32>
    %21 = arith.subf %18, %20 : vector<256x32xf32>
    %c0_7 = arith.constant 0 : index
    %c0_8 = arith.constant 0 : index
    %22 = vector.load %arg2[%c0_7, %c0_8] : memref<1x256xi32, #tpu.memory_space<vmem>>, vector<1x256xi32>
    %23 = tpu.iota {dimensions = array<i32: 0>} : vector<16x256xi32>
    %24 = vector.broadcast %22 : vector<1x256xi32> to vector<16x256xi32>
    %25 = arith.cmpi eq, %23, %24 : vector<16x256xi32>
    %26 = arith.extui %25 : vector<16x256xi1> to vector<16x256xi32>
    %27 = arith.sitofp %26 : vector<16x256xi32> to vector<16x256xf32>
    %c0_9 = arith.constant 0 : index
    %c0_10 = arith.constant 0 : index
    %c0_11 = arith.constant 0 : index
    %28 = vector.load %arg5[%c0_9, %c0_10, %c0_11] : memref<1x16x32xf32, #tpu.memory_space<vmem>>, vector<1x16x32xf32>
    %29 = vector.shape_cast %28 : vector<1x16x32xf32> to vector<16x32xf32>
    %cst_12 = arith.constant dense<0.000000e+00> : vector<16x32xf32>
    %30 = tpu.matmul %27, %21, %cst_12 {dimension_numbers = #tpu.dot_dimension_numbers<[1], [0], [0], [1], [0, 0, 1, 1], [], []>} : vector<16x256xf32>, vector<256x32xf32>, vector<16x32xf32> -> vector<16x32xf32>
    %31 = arith.addf %29, %30 : vector<16x32xf32>
    %c0_13 = arith.constant 0 : index
    %c0_14 = arith.constant 0 : index
    %c0_15 = arith.constant 0 : index
    %32 = vector.load %arg5[%c0_13, %c0_14, %c0_15] : memref<1x16x32xf32, #tpu.memory_space<vmem>>, vector<1x16x32xf32>
    %33 = vector.shape_cast %32 : vector<1x16x32xf32> to vector<16x32xf32>
    %34 = vector.shape_cast %31 : vector<16x32xf32> to vector<1x16x32xf32>
    tpu.vector_store %arg5[%c0_13, %c0_14, %c0_15], %34 {strides = array<i32>} : memref<1x16x32xf32, #tpu.memory_space<vmem>>, vector<1x16x32xf32>,
    return
  }
  func.func @transform_0(%arg0: i32, %arg1: i32) -> (i32, i32) {
    %c1_i32 = arith.constant 1 : i32
    %0 = arith.muli %arg0, %c1_i32 : i32
    %1 = arith.addi %0, %arg1 : i32
    %c0_i32 = arith.constant 0 : i32
    %c0_i32_0 = arith.constant 0 : i32
    return %c0_i32, %1 : i32, i32
  }
  func.func @transform_1(%arg0: i32, %arg1: i32) -> (i32, i32) {
    %c1_i32 = arith.constant 1 : i32
    %0 = arith.muli %arg0, %c1_i32 : i32
    %1 = arith.addi %0, %arg1 : i32
    %c0_i32 = arith.constant 0 : i32
    %c0_i32_0 = arith.constant 0 : i32
    return %1, %c0_i32 : i32, i32
  }
  func.func @transform_2(%arg0: i32, %arg1: i32) -> (i32, i32) {
    %c1_i32 = arith.constant 1 : i32
    %0 = arith.muli %arg0, %c1_i32 : i32
    %1 = arith.addi %0, %arg1 : i32
    %c0_i32 = arith.constant 0 : i32
    %c0_i32_0 = arith.constant 0 : i32
    return %1, %c0_i32 : i32, i32
  }
  func.func @transform_3(%arg0: i32, %arg1: i32) -> (i32, i32, i32) {
    %c0_i32 = arith.constant 0 : i32
    %c0_i32_0 = arith.constant 0 : i32
    %c0_i32_1 = arith.constant 0 : i32
    return %arg0, %c0_i32, %c0_i32_0 : i32, i32, i32
  }
}

</mosaic_0001>

<llo_original>
// kernel: tpu_custom_call.1
$region0: #{tpu_custom_call.1}
  #allocation0 [shape = 'u32[]', space=smem, size = 0x4, offset = 0x4, fixed_abs, tag = 'smem constant byte address 0x4 - core index']
  #allocation1 [shape = 'u32[144,128]{1,0:T(1,128)}', space=vmem, size = 0x12000, scoped, tag = 'internal scratch']
  %s0 = inlined_call_operand.vmem [shape: s32[1,256], index: 0, kind: input, shape index: {}]
  %s1 = inlined_call_operand.vmem [shape: f32[256,32], index: 1, kind: input, shape index: {}]
  %s2 = inlined_call_operand.vmem [shape: f32[256,32], index: 2, kind: input, shape index: {}]
  %s3 = inlined_call_operand.hbm [shape: f32[1,16,32], index: 3, kind: output, shape index: {}]
  %s4 = sld [smem:[#allocation0]]
  $region26: #{tpu_custom_call.1} parent=0
    _
  %s6 = ssub.s32 1, %s4
  %s7 = scalar_select 0, %s6, %s4
  $region1: #{tpu_custom_call.1} parent=0
    #allocation2 [shape = 'u8[8192]{0}', space=vmem, size = 0x2000, scoped, tag = 'output window, operand 0, single buffered']
    #allocation3 [shape = 's32[1]{0}', space=sflag, size = 0x4, scoped, tag = 'scoped memory for tpu_custom_call.1']
    %8 = vsyncpa [#allocation3], 0
    // Predicated region
    $region2: #{tpu_custom_call.1} parent=1 // pred_check
      _
    $region3: #{tpu_custom_call.1} parent=1 // pred_check_branch
      %10 = sbr.rel (0) target = $region5
    $region4: #{tpu_custom_call.1} parent=1 // pred_region
      %s11 = sadd.s32 0, 0
      %s12 = smul.u32 2, %s11
      %p13 = scmp.lt.s32.totalorder %s12, 1
      %s14 = scalar_select %p13, %s12, 1
      %s15 = scalar_lea.vmem %s0, %s14
      %s16 = sadd.s32 0, 0
      %s17 = smul.u32 2, %s16
    $region5: #{tpu_custom_call.1} parent=1 // pred_fallthru
      _
    // Predicated region
    $region6: #{tpu_custom_call.1} parent=1 // pred_check
      _
    $region7: #{tpu_custom_call.1} parent=1 // pred_check_branch
      %19 = sbr.rel (0) target = $region9
    $region8: #{tpu_custom_call.1} parent=1 // pred_region
      %s20 = sadd.s32 0, 0
      %s21 = smul.u32 32, %s20
      %p22 = scmp.lt.s32.totalorder %s21, 31
      %s23 = scalar_select %p22, %s21, 31
      %s24 = smul.addr %s23, 8
      %s25 = scalar_lea.vmem %s1, %s24
      %s26 = sadd.s32 0, 0
      %s27 = smul.u32 32, %s26
    $region9: #{tpu_custom_call.1} parent=1 // pred_fallthru
      _
    // Predicated region
    $region10: #{tpu_custom_call.1} parent=1 // pred_check
      _
    $region11: #{tpu_custom_call.1} parent=1 // pred_check_branch
      %29 = sbr.rel (0) target = $region13
    $region12: #{tpu_custom_call.1} parent=1 // pred_region
      %s30 = sadd.s32 0, 0
      %s31 = smul.u32 32, %s30
      %p32 = scmp.lt.s32.totalorder %s31, 31
      %s33 = scalar_select %p32, %s31, 31
      %s34 = smul.addr %s33, 8
      %s35 = scalar_lea.vmem %s2, %s34
      %s36 = sadd.s32 0, 0
      %s37 = smul.u32 32, %s36
    $region13: #{tpu_custom_call.1} parent=1 // pred_fallthru
      _
    %s38 = sadd.s32 0, 0
    %s39 = smul.u32 2, %s38
    %p40 = scmp.lt.s32.totalorder %s39, 1
    %s41 = scalar_select %p40, %s39, 1
    %s42 = scalar_lea.vmem %s0, %s41
    %s43 = sadd.s32 0, 0
    %s44 = smul.u32 32, %s43
    %p45 = scmp.lt.s32.totalorder %s44, 31
    %s46 = scalar_select %p45, %s44, 31
    %s47 = smul.addr %s46, 8
    %s48 = scalar_lea.vmem %s1, %s47
    %s49 = sadd.s32 0, 0
    %s50 = smul.u32 32, %s49
    %p51 = scmp.lt.s32.totalorder %s50, 31
    %s52 = scalar_select %p51, %s50, 31
    %s53 = smul.addr %s52, 8
    %s54 = scalar_lea.vmem %s2, %s53
    %s55 = sadd.s32 0, 0
    %s56 = smul.u32 2, %s55
    %p57 = scmp.lt.s32.totalorder %s56, 1
    %s58 = scalar_select %p57, %s56, 1
    %s59 = scalar_lea.vmem %s0, %s58
    %s60 = sadd.s32 0, 0
    %s61 = smul.u32 2, %s60
    %s62 = sadd.s32 0, 0
    %s63 = smul.u32 32, %s62
    %p64 = scmp.lt.s32.totalorder %s63, 31
    %s65 = scalar_select %p64, %s63, 31
    %s66 = smul.addr %s65, 8
    %s67 = scalar_lea.vmem %s1, %s66
    %s68 = sadd.s32 0, 0
    %s69 = smul.u32 32, %s68
    %s70 = sadd.s32 0, 0
    %s71 = smul.u32 32, %s70
    %p72 = scmp.lt.s32.totalorder %s71, 31
    %s73 = scalar_select %p72, %s71, 31
    %s74 = smul.addr %s73, 8
    %s75 = scalar_lea.vmem %s2, %s74
    %s76 = sadd.s32 0, 0
    %s77 = smul.u32 32, %s76
    %p78 = scmp.eq.s32.totalorder 0, 0
    // Predicated region
    $region14: #{tpu_custom_call.1} parent=1 // pred_check
      %p79 = pneg %p78
    $region15: #{tpu_custom_call.1} parent=1 // pred_check_branch
      %81 = sbr.rel (%p79) target = $region17
    $region16: #{tpu_custom_call.1} parent=1 // pred_region
      %vm82 = vcmask 261120
      %83 = vst.msk [vmem:[#allocation2] sm:$0xff] %vm82, 0.0
      %84 = vst.msk [vmem:[#allocation2 + $0x8] sm:$0xff] %vm82, 0.0
    $region17: #{tpu_custom_call.1} parent=1 // pred_fallthru
      _
    %v85 = vld [vmem:[%s67] sm:$0xff]
    %v86 = vld [vmem:[%s67 + $0x8] sm:$0xff]
    %v87 = vld [vmem:[%s67 + $0x10] sm:$0xff]
    %v88 = vld [vmem:[%s67 + $0x18] sm:$0xff]
    %v89 = vld [vmem:[%s67 + $0x20] sm:$0xff]
    %v90 = vld [vmem:[%s67 + $0x28] sm:$0xff]
    %v91 = vld [vmem:[%s67 + $0x30] sm:$0xff]
    %v92 = vld [vmem:[%s67 + $0x38] sm:$0xff]
    %v93 = vld [vmem:[%s67 + $0x40] sm:$0xff]
    %v94 = vld [vmem:[%s67 + $0x48] sm:$0xff]
    %v95 = vld [vmem:[%s67 + $0x50] sm:$0xff]
    %v96 = vld [vmem:[%s67 + $0x58] sm:$0xff]
    %v97 = vld [vmem:[%s67 + $0x60] sm:$0xff]
    %v98 = vld [vmem:[%s67 + $0x68] sm:$0xff]
    %v99 = vld [vmem:[%s67 + $0x70] sm:$0xff]
    %v100 = vld [vmem:[%s67 + $0x78] sm:$0xff]
    %v101 = vld [vmem:[%s67 + $0x80] sm:$0xff]
    %v102 = vld [vmem:[%s67 + $0x88] sm:$0xff]
    %v103 = vld [vmem:[%s67 + $0x90] sm:$0xff]
    %v104 = vld [vmem:[%s67 + $0x98] sm:$0xff]
    %v105 = vld [vmem:[%s67 + $0xa0] sm:$0xff]
    %v106 = vld [vmem:[%s67 + $0xa8] sm:$0xff]
    %v107 = vld [vmem:[%s67 + $0xb0] sm:$0xff]
    %v108 = vld [vmem:[%s67 + $0xb8] sm:$0xff]
    %v109 = vld [vmem:[%s67 + $0xc0] sm:$0xff]
    %v110 = vld [vmem:[%s67 + $0xc8] sm:$0xff]
    %v111 = vld [vmem:[%s67 + $0xd0] sm:$0xff]
    %v112 = vld [vmem:[%s67 + $0xd8] sm:$0xff]
    %v113 = vld [vmem:[%s67 + $0xe0] sm:$0xff]
    %v114 = vld [vmem:[%s67 + $0xe8] sm:$0xff]
    %v115 = vld [vmem:[%s67 + $0xf0] sm:$0xff]
    %v116 = vld [vmem:[%s67 + $0xf8] sm:$0xff]
    %v117 = vld [vmem:[%s75] sm:$0xff]
    %v118 = vld [vmem:[%s75 + $0x8] sm:$0xff]
    %v119 = vld [vmem:[%s75 + $0x10] sm:$0xff]
    %v120 = vld [vmem:[%s75 + $0x18] sm:$0xff]
    %v121 = vld [vmem:[%s75 + $0x20] sm:$0xff]
    %v122 = vld [vmem:[%s75 + $0x28] sm:$0xff]
    %v123 = vld [vmem:[%s75 + $0x30] sm:$0xff]
    %v124 = vld [vmem:[%s75 + $0x38] sm:$0xff]
    %v125 = vld [vmem:[%s75 + $0x40] sm:$0xff]
    %v126 = vld [vmem:[%s75 + $0x48] sm:$0xff]
    %v127 = vld [vmem:[%s75 + $0x50] sm:$0xff]
    %v128 = vld [vmem:[%s75 + $0x58] sm:$0xff]
    %v129 = vld [vmem:[%s75 + $0x60] sm:$0xff]
    %v130 = vld [vmem:[%s75 + $0x68] sm:$0xff]
    %v131 = vld [vmem:[%s75 + $0x70] sm:$0xff]
    %v132 = vld [vmem:[%s75 + $0x78] sm:$0xff]
    %v133 = vld [vmem:[%s75 + $0x80] sm:$0xff]
    %v134 = vld [vmem:[%s75 + $0x88] sm:$0xff]
    %v135 = vld [vmem:[%s75 + $0x90] sm:$0xff]
    %v136 = vld [vmem:[%s75 + $0x98] sm:$0xff]
    %v137 = vld [vmem:[%s75 + $0xa0] sm:$0xff]
    %v138 = vld [vmem:[%s75 + $0xa8] sm:$0xff]
    %v139 = vld [vmem:[%s75 + $0xb0] sm:$0xff]
    %v140 = vld [vmem:[%s75 + $0xb8] sm:$0xff]
    %v141 = vld [vmem:[%s75 + $0xc0] sm:$0xff]
    %v142 = vld [vmem:[%s75 + $0xc8] sm:$0xff]
    %v143 = vld [vmem:[%s75 + $0xd0] sm:$0xff]
    %v144 = vld [vmem:[%s75 + $0xd8] sm:$0xff]
    %v145 = vld [vmem:[%s75 + $0xe0] sm:$0xff]
    %v146 = vld [vmem:[%s75 + $0xe8] sm:$0xff]
    %v147 = vld [vmem:[%s75 + $0xf0] sm:$0xff]
    %v148 = vld [vmem:[%s75 + $0xf8] sm:$0xff]
    %v149 = vmul.f32 %v85, %v85
    %v150 = vmul.f32 %v86, %v86
    %v151 = vmul.f32 %v87, %v87
    %v152 = vmul.f32 %v88, %v88
    %v153 = vmul.f32 %v89, %v89
    %v154 = vmul.f32 %v90, %v90
    %v155 = vmul.f32 %v91, %v91
    %v156 = vmul.f32 %v92, %v92
    %v157 = vmul.f32 %v93, %v93
    %v158 = vmul.f32 %v94, %v94
    %v159 = vmul.f32 %v95, %v95
    %v160 = vmul.f32 %v96, %v96
    %v161 = vmul.f32 %v97, %v97
    %v162 = vmul.f32 %v98, %v98
    %v163 = vmul.f32 %v99, %v99
    %v164 = vmul.f32 %v100, %v100
    %v165 = vmul.f32 %v101, %v101
    %v166 = vmul.f32 %v102, %v102
    %v167 = vmul.f32 %v103, %v103
    %v168 = vmul.f32 %v104, %v104
    %v169 = vmul.f32 %v105, %v105
    %v170 = vmul.f32 %v106, %v106
    %v171 = vmul.f32 %v107, %v107
    %v172 = vmul.f32 %v108, %v108
    %v173 = vmul.f32 %v109, %v109
    %v174 = vmul.f32 %v110, %v110
    %v175 = vmul.f32 %v111, %v111
    %v176 = vmul.f32 %v112, %v112
    %v177 = vmul.f32 %v113, %v113
    %v178 = vmul.f32 %v114, %v114
    %v179 = vmul.f32 %v115, %v115
    %v180 = vmul.f32 %v116, %v116
    %vm181 = vcmask 261120
    %v182 = vsel %vm181, %v149, 0.0
    %183 = vadd.xlane.f32.xlu0 %v182
    %v184 = vpop.xlane.xlu0 %183
    %v185 = vsel %vm181, %v150, 0.0
    %186 = vadd.xlane.f32.xlu0 %v185
    %v187 = vpop.xlane.xlu0 %186
    %v188 = vsel %vm181, %v151, 0.0
    %189 = vadd.xlane.f32.xlu0 %v188
    %v190 = vpop.xlane.xlu0 %189
    %v191 = vsel %vm181, %v152, 0.0
    %192 = vadd.xlane.f32.xlu0 %v191
    %v193 = vpop.xlane.xlu0 %192
    %v194 = vsel %vm181, %v153, 0.0
    %195 = vadd.xlane.f32.xlu0 %v194
    %v196 = vpop.xlane.xlu0 %195
    %v197 = vsel %vm181, %v154, 0.0
    %198 = vadd.xlane.f32.xlu0 %v197
    %v199 = vpop.xlane.xlu0 %198
    %v200 = vsel %vm181, %v155, 0.0
    %201 = vadd.xlane.f32.xlu0 %v200
    %v202 = vpop.xlane.xlu0 %201
    %v203 = vsel %vm181, %v156, 0.0
    %204 = vadd.xlane.f32.xlu0 %v203
    %v205 = vpop.xlane.xlu0 %204
    %v206 = vsel %vm181, %v157, 0.0
    %207 = vadd.xlane.f32.xlu0 %v206
    %v208 = vpop.xlane.xlu0 %207
    %v209 = vsel %vm181, %v158, 0.0
    %210 = vadd.xlane.f32.xlu0 %v209
    %v211 = vpop.xlane.xlu0 %210
    %v212 = vsel %vm181, %v159, 0.0
    %213 = vadd.xlane.f32.xlu0 %v212
    %v214 = vpop.xlane.xlu0 %213
    %v215 = vsel %vm181, %v160, 0.0
    %216 = vadd.xlane.f32.xlu0 %v215
    %v217 = vpop.xlane.xlu0 %216
    %v218 = vsel %vm181, %v161, 0.0
    %219 = vadd.xlane.f32.xlu0 %v218
    %v220 = vpop.xlane.xlu0 %219
    %v221 = vsel %vm181, %v162, 0.0
    %222 = vadd.xlane.f32.xlu0 %v221
    %v223 = vpop.xlane.xlu0 %222
    %v224 = vsel %vm181, %v163, 0.0
    %225 = vadd.xlane.f32.xlu0 %v224
    %v226 = vpop.xlane.xlu0 %225
    %v227 = vsel %vm181, %v164, 0.0
    %228 = vadd.xlane.f32.xlu0 %v227
    %v229 = vpop.xlane.xlu0 %228
    %v230 = vsel %vm181, %v165, 0.0
    %231 = vadd.xlane.f32.xlu0 %v230
    %v232 = vpop.xlane.xlu0 %231
    %v233 = vsel %vm181, %v166, 0.0
    %234 = vadd.xlane.f32.xlu0 %v233
    %v235 = vpop.xlane.xlu0 %234
    %v236 = vsel %vm181, %v167, 0.0
    %237 = vadd.xlane.f32.xlu0 %v236
    %v238 = vpop.xlane.xlu0 %237
    %v239 = vsel %vm181, %v168, 0.0
    %240 = vadd.xlane.f32.xlu0 %v239
    %v241 = vpop.xlane.xlu0 %240
    %v242 = vsel %vm181, %v169, 0.0
    %243 = vadd.xlane.f32.xlu0 %v242
    %v244 = vpop.xlane.xlu0 %243
    %v245 = vsel %vm181, %v170, 0.0
    %246 = vadd.xlane.f32.xlu0 %v245
    %v247 = vpop.xlane.xlu0 %246
    %v248 = vsel %vm181, %v171, 0.0
    %249 = vadd.xlane.f32.xlu0 %v248
    %v250 = vpop.xlane.xlu0 %249
    %v251 = vsel %vm181, %v172, 0.0
    %252 = vadd.xlane.f32.xlu0 %v251
    %v253 = vpop.xlane.xlu0 %252
    %v254 = vsel %vm181, %v173, 0.0
    %255 = vadd.xlane.f32.xlu0 %v254
    %v256 = vpop.xlane.xlu0 %255
    %v257 = vsel %vm181, %v174, 0.0
    %258 = vadd.xlane.f32.xlu0 %v257
    %v259 = vpop.xlane.xlu0 %258
    %v260 = vsel %vm181, %v175, 0.0
    %261 = vadd.xlane.f32.xlu0 %v260
    %v262 = vpop.xlane.xlu0 %261
    %v263 = vsel %vm181, %v176, 0.0
    %264 = vadd.xlane.f32.xlu0 %v263
    %v265 = vpop.xlane.xlu0 %264
    %v266 = vsel %vm181, %v177, 0.0
    %267 = vadd.xlane.f32.xlu0 %v266
    %v268 = vpop.xlane.xlu0 %267
    %v269 = vsel %vm181, %v178, 0.0
    %270 = vadd.xlane.f32.xlu0 %v269
    %v271 = vpop.xlane.xlu0 %270
    %v272 = vsel %vm181, %v179, 0.0
    %273 = vadd.xlane.f32.xlu0 %v272
    %v274 = vpop.xlane.xlu0 %273
    %v275 = vsel %vm181, %v180, 0.0
    %276 = vadd.xlane.f32.xlu0 %v275
    %v277 = vpop.xlane.xlu0 %276
    %v278 = vmax.f32 %v184, 1e-12
    %v279 = vmax.f32 %v187, 1e-12
    %v280 = vmax.f32 %v190, 1e-12
    %v281 = vmax.f32 %v193, 1e-12
    %v282 = vmax.f32 %v196, 1e-12
    %v283 = vmax.f32 %v199, 1e-12
    %v284 = vmax.f32 %v202, 1e-12
    %v285 = vmax.f32 %v205, 1e-12
    %v286 = vmax.f32 %v208, 1e-12
    %v287 = vmax.f32 %v211, 1e-12
    %v288 = vmax.f32 %v214, 1e-12
    %v289 = vmax.f32 %v217, 1e-12
    %v290 = vmax.f32 %v220, 1e-12
    %v291 = vmax.f32 %v223, 1e-12
    %v292 = vmax.f32 %v226, 1e-12
    %v293 = vmax.f32 %v229, 1e-12
    %v294 = vmax.f32 %v232, 1e-12
    %v295 = vmax.f32 %v235, 1e-12
    %v296 = vmax.f32 %v238, 1e-12
    %v297 = vmax.f32 %v241, 1e-12
    %v298 = vmax.f32 %v244, 1e-12
    %v299 = vmax.f32 %v247, 1e-12
    %v300 = vmax.f32 %v250, 1e-12
    %v301 = vmax.f32 %v253, 1e-12
    %v302 = vmax.f32 %v256, 1e-12
    %v303 = vmax.f32 %v259, 1e-12
    %v304 = vmax.f32 %v262, 1e-12
    %v305 = vmax.f32 %v265, 1e-12
    %v306 = vmax.f32 %v268, 1e-12
    %v307 = vmax.f32 %v271, 1e-12
    %v308 = vmax.f32 %v274, 1e-12
    %v309 = vmax.f32 %v277, 1e-12
    %v310 = vrsqrt.pop %v278
    %v311 = vrsqrt.pop %v279
    %v312 = vrsqrt.pop %v280
    %v313 = vrsqrt.pop %v281
    %v314 = vrsqrt.pop %v282
    %v315 = vrsqrt.pop %v283
    %v316 = vrsqrt.pop %v284
    %v317 = vrsqrt.pop %v285
    %v318 = vrsqrt.pop %v286
    %v319 = vrsqrt.pop %v287
    %v320 = vrsqrt.pop %v288
    %v321 = vrsqrt.pop %v289
    %v322 = vrsqrt.pop %v290
    %v323 = vrsqrt.pop %v291
    %v324 = vrsqrt.pop %v292
    %v325 = vrsqrt.pop %v293
    %v326 = vrsqrt.pop %v294
    %v327 = vrsqrt.pop %v295
    %v328 = vrsqrt.pop %v296
    %v329 = vrsqrt.pop %v297
    %v330 = vrsqrt.pop %v298
    %v331 = vrsqrt.pop %v299
    %v332 = vrsqrt.pop %v300
    %v333 = vrsqrt.pop %v301
    %v334 = vrsqrt.pop %v302
    %v335 = vrsqrt.pop %v303
    %v336 = vrsqrt.pop %v304
    %v337 = vrsqrt.pop %v305
    %v338 = vrsqrt.pop %v306
    %v339 = vrsqrt.pop %v307
    %v340 = vrsqrt.pop %v308
    %v341 = vrsqrt.pop %v309
    %v342 = vmul.f32 %v117, %v117
    %v343 = vmul.f32 %v118, %v118
    %v344 = vmul.f32 %v119, %v119
    %v345 = vmul.f32 %v120, %v120
    %v346 = vmul.f32 %v121, %v121
    %v347 = vmul.f32 %v122, %v122
    %v348 = vmul.f32 %v123, %v123
    %v349 = vmul.f32 %v124, %v124
    %v350 = vmul.f32 %v125, %v125
    %v351 = vmul.f32 %v126, %v126
    %v352 = vmul.f32 %v127, %v127
    %v353 = vmul.f32 %v128, %v128
    %v354 = vmul.f32 %v129, %v129
    %v355 = vmul.f32 %v130, %v130
    %v356 = vmul.f32 %v131, %v131
    %v357 = vmul.f32 %v132, %v132
    %v358 = vmul.f32 %v133, %v133
    %v359 = vmul.f32 %v134, %v134
    %v360 = vmul.f32 %v135, %v135
    %v361 = vmul.f32 %v136, %v136
    %v362 = vmul.f32 %v137, %v137
    %v363 = vmul.f32 %v138, %v138
    %v364 = vmul.f32 %v139, %v139
    %v365 = vmul.f32 %v140, %v140
    %v366 = vmul.f32 %v141, %v141
    %v367 = vmul.f32 %v142, %v142
    %v368 = vmul.f32 %v143, %v143
    %v369 = vmul.f32 %v144, %v144
    %v370 = vmul.f32 %v145, %v145
    %v371 = vmul.f32 %v146, %v146
    %v372 = vmul.f32 %v147, %v147
    %v373 = vmul.f32 %v148, %v148
    %v374 = vsel %vm181, %v342, 0.0
    %375 = vadd.xlane.f32.xlu0 %v374
    %v376 = vpop.xlane.xlu0 %375
    %v377 = vsel %vm181, %v343, 0.0
    %378 = vadd.xlane.f32.xlu0 %v377
    %v379 = vpop.xlane.xlu0 %378
    %v380 = vsel %vm181, %v344, 0.0
    %381 = vadd.xlane.f32.xlu0 %v380
    %v382 = vpop.xlane.xlu0 %381
    %v383 = vsel %vm181, %v345, 0.0
    %384 = vadd.xlane.f32.xlu0 %v383
    %v385 = vpop.xlane.xlu0 %384
    %v386 = vsel %vm181, %v346, 0.0
    %387 = vadd.xlane.f32.xlu0 %v386
    %v388 = vpop.xlane.xlu0 %387
    %v389 = vsel %vm181, %v347, 0.0
    %390 = vadd.xlane.f32.xlu0 %v389
    %v391 = vpop.xlane.xlu0 %390
    %v392 = vsel %vm181, %v348, 0.0
    %393 = vadd.xlane.f32.xlu0 %v392
    %v394 = vpop.xlane.xlu0 %393
    %v395 = vsel %vm181, %v349, 0.0
    %396 = vadd.xlane.f32.xlu0 %v395
    %v397 = vpop.xlane.xlu0 %396
    %v398 = vsel %vm181, %v350, 0.0
    %399 = vadd.xlane.f32.xlu0 %v398
    %v400 = vpop.xlane.xlu0 %399
    %v401 = vsel %vm181, %v351, 0.0
    %402 = vadd.xlane.f32.xlu0 %v401
    %v403 = vpop.xlane.xlu0 %402
    %v404 = vsel %vm181, %v352, 0.0
    %405 = vadd.xlane.f32.xlu0 %v404
    %v406 = vpop.xlane.xlu0 %405
    %v407 = vsel %vm181, %v353, 0.0
    %408 = vadd.xlane.f32.xlu0 %v407
    %v409 = vpop.xlane.xlu0 %408
    %v410 = vsel %vm181, %v354, 0.0
    %411 = vadd.xlane.f32.xlu0 %v410
    %v412 = vpop.xlane.xlu0 %411
    %v413 = vsel %vm181, %v355, 0.0
    %414 = vadd.xlane.f32.xlu0 %v413
    %v415 = vpop.xlane.xlu0 %414
    %v416 = vsel %vm181, %v356, 0.0
    %417 = vadd.xlane.f32.xlu0 %v416
    %v418 = vpop.xlane.xlu0 %417
    %v419 = vsel %vm181, %v357, 0.0
    %420 = vadd.xlane.f32.xlu0 %v419
    %v421 = vpop.xlane.xlu0 %420
    %v422 = vsel %vm181, %v358, 0.0
    %423 = vadd.xlane.f32.xlu0 %v422
    %v424 = vpop.xlane.xlu0 %423
    %v425 = vsel %vm181, %v359, 0.0
    %426 = vadd.xlane.f32.xlu0 %v425
    %v427 = vpop.xlane.xlu0 %426
    %v428 = vsel %vm181, %v360, 0.0
    %429 = vadd.xlane.f32.xlu0 %v428
    %v430 = vpop.xlane.xlu0 %429
    %v431 = vsel %vm181, %v361, 0.0
    %432 = vadd.xlane.f32.xlu0 %v431
    %v433 = vpop.xlane.xlu0 %432
    %v434 = vsel %vm181, %v362, 0.0
    %435 = vadd.xlane.f32.xlu0 %v434
    %v436 = vpop.xlane.xlu0 %435
    %v437 = vsel %vm181, %v363, 0.0
    %438 = vadd.xlane.f32.xlu0 %v437
    %v439 = vpop.xlane.xlu0 %438
    %v440 = vsel %vm181, %v364, 0.0
    %441 = vadd.xlane.f32.xlu0 %v440
    %v442 = vpop.xlane.xlu0 %441
    %v443 = vsel %vm181, %v365, 0.0
    %444 = vadd.xlane.f32.xlu0 %v443
    %v445 = vpop.xlane.xlu0 %444
    %v446 = vsel %vm181, %v366, 0.0
    %447 = vadd.xlane.f32.xlu0 %v446
    %v448 = vpop.xlane.xlu0 %447
    %v449 = vsel %vm181, %v367, 0.0
    %450 = vadd.xlane.f32.xlu0 %v449
    %v451 = vpop.xlane.xlu0 %450
    %v452 = vsel %vm181, %v368, 0.0
    %453 = vadd.xlane.f32.xlu0 %v452
    %v454 = vpop.xlane.xlu0 %453
    %v455 = vsel %vm181, %v369, 0.0
    %456 = vadd.xlane.f32.xlu0 %v455
    %v457 = vpop.xlane.xlu0 %456
    %v458 = vsel %vm181, %v370, 0.0
    %459 = vadd.xlane.f32.xlu0 %v458
    %v460 = vpop.xlane.xlu0 %459
    %v461 = vsel %vm181, %v371, 0.0
    %462 = vadd.xlane.f32.xlu0 %v461
    %v463 = vpop.xlane.xlu0 %462
    %v464 = vsel %vm181, %v372, 0.0
    %465 = vadd.xlane.f32.xlu0 %v464
    %v466 = vpop.xlane.xlu0 %465
    %v467 = vsel %vm181, %v373, 0.0
    %468 = vadd.xlane.f32.xlu0 %v467
    %v469 = vpop.xlane.xlu0 %468
    %v470 = vmax.f32 %v376, 1e-12
    %v471 = vmax.f32 %v379, 1e-12
    %v472 = vmax.f32 %v382, 1e-12
    %v473 = vmax.f32 %v385, 1e-12
    %v474 = vmax.f32 %v388, 1e-12
    %v475 = vmax.f32 %v391, 1e-12
    %v476 = vmax.f32 %v394, 1e-12
    %v477 = vmax.f32 %v397, 1e-12
    %v478 = vmax.f32 %v400, 1e-12
    %v479 = vmax.f32 %v403, 1e-12
    %v480 = vmax.f32 %v406, 1e-12
    %v481 = vmax.f32 %v409, 1e-12
    %v482 = vmax.f32 %v412, 1e-12
    %v483 = vmax.f32 %v415, 1e-12
    %v484 = vmax.f32 %v418, 1e-12
    %v485 = vmax.f32 %v421, 1e-12
    %v486 = vmax.f32 %v424, 1e-12
    %v487 = vmax.f32 %v427, 1e-12
    %v488 = vmax.f32 %v430, 1e-12
    %v489 = vmax.f32 %v433, 1e-12
    %v490 = vmax.f32 %v436, 1e-12
    %v491 = vmax.f32 %v439, 1e-12
    %v492 = vmax.f32 %v442, 1e-12
    %v493 = vmax.f32 %v445, 1e-12
    %v494 = vmax.f32 %v448, 1e-12
    %v495 = vmax.f32 %v451, 1e-12
    %v496 = vmax.f32 %v454, 1e-12
    %v497 = vmax.f32 %v457, 1e-12
    %v498 = vmax.f32 %v460, 1e-12
    %v499 = vmax.f32 %v463, 1e-12
    %v500 = vmax.f32 %v466, 1e-12
    %v501 = vmax.f32 %v469, 1e-12
    %v502 = vrsqrt.pop %v470
    %v503 = vrsqrt.pop %v471
    %v504 = vrsqrt.pop %v472
    %v505 = vrsqrt.pop %v473
    %v506 = vrsqrt.pop %v474
    %v507 = vrsqrt.pop %v475
    %v508 = vrsqrt.pop %v476
    %v509 = vrsqrt.pop %v477
    %v510 = vrsqrt.pop %v478
    %v511 = vrsqrt.pop %v479
    %v512 = vrsqrt.pop %v480
    %v513 = vrsqrt.pop %v481
    %v514 = vrsqrt.pop %v482
    %v515 = vrsqrt.pop %v483
    %v516 = vrsqrt.pop %v484
    %v517 = vrsqrt.pop %v485
    %v518 = vrsqrt.pop %v486
    %v519 = vrsqrt.pop %v487
    %v520 = vrsqrt.pop %v488
    %v521 = vrsqrt.pop %v489
    %v522 = vrsqrt.pop %v490
    %v523 = vrsqrt.pop %v491
    %v524 = vrsqrt.pop %v492
    %v525 = vrsqrt.pop %v493
    %v526 = vrsqrt.pop %v494
    %v527 = vrsqrt.pop %v495
    %v528 = vrsqrt.pop %v496
    %v529 = vrsqrt.pop %v497
    %v530 = vrsqrt.pop %v498
    %v531 = vrsqrt.pop %v499
    %v532 = vrsqrt.pop %v500
    %v533 = vrsqrt.pop %v501
    %v534 = vmul.f32 %v85, %v310
    %v535 = vmul.f32 %v86, %v311
    %v536 = vmul.f32 %v87, %v312
    %v537 = vmul.f32 %v88, %v313
    %v538 = vmul.f32 %v89, %v314
    %v539 = vmul.f32 %v90, %v315
    %v540 = vmul.f32 %v91, %v316
    %v541 = vmul.f32 %v92, %v317
    %v542 = vmul.f32 %v93, %v318
    %v543 = vmul.f32 %v94, %v319
    %v544 = vmul.f32 %v95, %v320
    %v545 = vmul.f32 %v96, %v321
    %v546 = vmul.f32 %v97, %v322
    %v547 = vmul.f32 %v98, %v323
    %v548 = vmul.f32 %v99, %v324
    %v549 = vmul.f32 %v100, %v325
    %v550 = vmul.f32 %v101, %v326
    %v551 = vmul.f32 %v102, %v327
    %v552 = vmul.f32 %v103, %v328
    %v553 = vmul.f32 %v104, %v329
    %v554 = vmul.f32 %v105, %v330
    %v555 = vmul.f32 %v106, %v331
    %v556 = vmul.f32 %v107, %v332
    %v557 = vmul.f32 %v108, %v333
    %v558 = vmul.f32 %v109, %v334
    %v559 = vmul.f32 %v110, %v335
    %v560 = vmul.f32 %v111, %v336
    %v561 = vmul.f32 %v112, %v337
    %v562 = vmul.f32 %v113, %v338
    %v563 = vmul.f32 %v114, %v339
    %v564 = vmul.f32 %v115, %v340
    %v565 = vmul.f32 %v116, %v341
    %v566 = vmul.f32 %v117, %v502
    %v567 = vmul.f32 %v118, %v503
    %v568 = vmul.f32 %v119, %v504
    %v569 = vmul.f32 %v120, %v505
    %v570 = vmul.f32 %v121, %v506
    %v571 = vmul.f32 %v122, %v507
    %v572 = vmul.f32 %v123, %v508
    %v573 = vmul.f32 %v124, %v509
    %v574 = vmul.f32 %v125, %v510
    %v575 = vmul.f32 %v126, %v511
    %v576 = vmul.f32 %v127, %v512
    %v577 = vmul.f32 %v128, %v513
    %v578 = vmul.f32 %v129, %v514
    %v579 = vmul.f32 %v130, %v515
    %v580 = vmul.f32 %v131, %v516
    %v581 = vmul.f32 %v132, %v517
    %v582 = vmul.f32 %v133, %v518
    %v583 = vmul.f32 %v134, %v519
    %v584 = vmul.f32 %v135, %v520
    %v585 = vmul.f32 %v136, %v521
    %v586 = vmul.f32 %v137, %v522
    %v587 = vmul.f32 %v138, %v523
    %v588 = vmul.f32 %v139, %v524
    %v589 = vmul.f32 %v140, %v525
    %v590 = vmul.f32 %v141, %v526
    %v591 = vmul.f32 %v142, %v527
    %v592 = vmul.f32 %v143, %v528
    %v593 = vmul.f32 %v144, %v529
    %v594 = vmul.f32 %v145, %v530
    %v595 = vmul.f32 %v146, %v531
    %v596 = vmul.f32 %v147, %v532
    %v597 = vmul.f32 %v148, %v533
    %v598 = vsub.f32 %v534, %v566
    %v599 = vsub.f32 %v535, %v567
    %v600 = vsub.f32 %v536, %v568
    %v601 = vsub.f32 %v537, %v569
    %v602 = vsub.f32 %v538, %v570
    %v603 = vsub.f32 %v539, %v571
    %v604 = vsub.f32 %v540, %v572
    %v605 = vsub.f32 %v541, %v573
    %v606 = vsub.f32 %v542, %v574
    %v607 = vsub.f32 %v543, %v575
    %v608 = vsub.f32 %v544, %v576
    %v609 = vsub.f32 %v545, %v577
    %v610 = vsub.f32 %v546, %v578
    %v611 = vsub.f32 %v547, %v579
    %v612 = vsub.f32 %v548, %v580
    %v613 = vsub.f32 %v549, %v581
    %v614 = vsub.f32 %v550, %v582
    %v615 = vsub.f32 %v551, %v583
    %v616 = vsub.f32 %v552, %v584
    %v617 = vsub.f32 %v553, %v585
    %v618 = vsub.f32 %v554, %v586
    %v619 = vsub.f32 %v555, %v587
    %v620 = vsub.f32 %v556, %v588
    %v621 = vsub.f32 %v557, %v589
    %v622 = vsub.f32 %v558, %v590
    %v623 = vsub.f32 %v559, %v591
    %v624 = vsub.f32 %v560, %v592
    %v625 = vsub.f32 %v561, %v593
    %v626 = vsub.f32 %v562, %v594
    %v627 = vsub.f32 %v563, %v595
    %v628 = vsub.f32 %v564, %v596
    %v629 = vsub.f32 %v565, %v597
    %v630 = vld [vmem:[%s59] sm:$0x3]
    %v631 = vlaneseq
    %v632 = vshrl.u32 %v631, 7
    %v633 = vadd.s32 %v632, 8
    %v634 = vlaneseq
    %v635 = vshrl.u32 %v634, 7
    %v636 = vsub.s32 0, %v635
    %v637 = vrot.slane %v630, %v636
    %v638 = vlaneseq
    %v639 = vshrl.u32 %v638, 7
    %v640 = vsub.s32 1, %v639
    %v641 = vrot.slane %v630, %v640
    %vm642 = vcmp.eq.s32.totalorder %v632, %v637
    %vm643 = vcmp.eq.s32.totalorder %v632, %v641
    %vm644 = vcmp.eq.s32.totalorder %v633, %v637
    %vm645 = vcmp.eq.s32.totalorder %v633, %v641
    %v646 = vsel %vm642, 1, 0
    %v647 = vsel %vm643, 1, 0
    %v648 = vsel %vm644, 1, 0
    %v649 = vsel %vm645, 1, 0
    %v650 = vcvt.s32.f32 %v646
    %v651 = vcvt.s32.f32 %v647
    %v652 = vcvt.s32.f32 %v648
    %v653 = vcvt.s32.f32 %v649
    %v654 = vld [vmem:[#allocation2] sm:$0xff]
    %v655 = vld [vmem:[#allocation2 + $0x8] sm:$0xff]
    %656 = vmatprep.subr.mxu0 0.0
    %657 = vmatpush1.msra.mxu0 %v613
    %658 = vmatprep.subr.mxu0 0.0
    %659 = vmatpush1.msra.mxu0 %v612
    %660 = vmatprep.subr.mxu0 0.0
    %661 = vmatpush1.msra.mxu0 %v611
    %662 = vmatprep.subr.mxu0 0.0
    %663 = vmatpush1.msra.mxu0 %v610
    %664 = vmatprep.subr.mxu0 0.0
    %665 = vmatpush1.msra.mxu0 %v609
    %666 = vmatprep.subr.mxu0 0.0
    %667 = vmatpush1.msra.mxu0 %v608
    %668 = vmatprep.subr.mxu0 0.0
    %669 = vmatpush1.msra.mxu0 %v607
    %670 = vmatprep.subr.mxu0 0.0
    %671 = vmatpush1.msra.mxu0 %v606
    %672 = vmatprep.subr.mxu0 0.0
    %673 = vmatpush1.msra.mxu0 %v605
    %674 = vmatprep.subr.mxu0 0.0
    %675 = vmatpush1.msra.mxu0 %v604
    %676 = vmatprep.subr.mxu0 0.0
    %677 = vmatpush1.msra.mxu0 %v603
    %678 = vmatprep.subr.mxu0 0.0
    %679 = vmatpush1.msra.mxu0 %v602
    %680 = vmatprep.subr.mxu0 0.0
    %681 = vmatpush1.msra.mxu0 %v601
    %682 = vmatprep.subr.mxu0 0.0
    %683 = vmatpush1.msra.mxu0 %v600
    %684 = vmatprep.subr.mxu0 0.0
    %685 = vmatpush1.msra.mxu0 %v599
    %686 = vmatprep.subr.mxu0 0.0
    %687 = vmatpush1.msra.mxu0 %v598
    %688 = vmatprep.subr.mxu0 0.0
    %689 = vmatpush2.msra.mxu0 %v629
    %690 = vmatprep.subr.mxu0 0.0
    %691 = vmatpush2.msra.mxu0 %v628
    %692 = vmatprep.subr.mxu0 0.0
    %693 = vmatpush2.msra.mxu0 %v627
    %694 = vmatprep.subr.mxu0 0.0
    %695 = vmatpush2.msra.mxu0 %v626
    %696 = vmatprep.subr.mxu0 0.0
    %697 = vmatpush2.msra.mxu0 %v625
    %698 = vmatprep.subr.mxu0 0.0
    %699 = vmatpush2.msra.mxu0 %v624
    %700 = vmatprep.subr.mxu0 0.0
    %701 = vmatpush2.msra.mxu0 %v623
    %702 = vmatprep.subr.mxu0 0.0
    %703 = vmatpush2.msra.mxu0 %v622
    %704 = vmatprep.subr.mxu0 0.0
    %705 = vmatpush2.msra.mxu0 %v621
    %706 = vmatprep.subr.mxu0 0.0
    %707 = vmatpush2.msra.mxu0 %v620
    %708 = vmatprep.subr.mxu0 0.0
    %709 = vmatpush2.msra.mxu0 %v619
    %710 = vmatprep.subr.mxu0 0.0
    %711 = vmatpush2.msra.mxu0 %v618
    %712 = vmatprep.subr.mxu0 0.0
    %713 = vmatpush2.msra.mxu0 %v617
    %714 = vmatprep.subr.mxu0 0.0
    %715 = vmatpush2.msra.mxu0 %v616
    %716 = vmatprep.subr.mxu0 0.0
    %717 = vmatpush2.msra.mxu0 %v615
    %718 = vmatprep.subr.mxu0 0.0
    %719 = vmatpush2.msra.mxu0 %v614
    %720 = vmatprep.mubr.f32.mxu0 %v651
    %721 = vmatmul.mubr.f32.gmra.mxu0 %v650
    %v722 = vpop.f32.mrf.mxu0
    %v723 = vadd.f32 0.0, %v722
    %v724 = vpop.f32.mrf.mxu0
    %725 = vmatprep.mubr.f32.mxu0 %v653
    %726 = vmatmul.mubr.f32.gmra.mxu0 %v652
    %v727 = vpop.f32.mrf.mxu0
    %v728 = vadd.f32 0.0, %v727
    %v729 = vpop.f32.mrf.mxu0
    %730 = vdwg.mxu0
    %v731 = vadd.f32 %v654, %v723
    %v732 = vadd.f32 %v655, %v728
    %733 = vst.msk [vmem:[#allocation2] sm:$0xff] %vm181, %v731
    %734 = vst.msk [vmem:[#allocation2 + $0x8] sm:$0xff] %vm181, %v732
    // Predicated region
    $region18: #{tpu_custom_call.1} parent=1 // pred_check
      _
    $region19: #{tpu_custom_call.1} parent=1 // pred_check_branch
      %736 = sbr.rel (0) target = $region21
    $region20: #{tpu_custom_call.1} parent=1 // pred_region
      %s738 = ssub.s32 256, 256
      %739 = vsyncadd [#allocation3], %s738
      %s740 = sshll.u32 [#allocation2], 4
      %s741 = int_to_ptr.vmem [resolvable:$true] %s740
      %746 = dma.vmem_to_hbm [thread:$0]  %s741, 256, %s3, [#allocation3], 128, 128, 8
    $region21: #{tpu_custom_call.1} parent=1 // pred_fallthru
      _
    // Predicated region
    $region22: #{tpu_custom_call.1} parent=1 // pred_check
      _
    $region23: #{tpu_custom_call.1} parent=1 // pred_check_branch
      %748 = sbr.rel (0) target = $region25
    $region24: #{tpu_custom_call.1} parent=1 // pred_region
      %749 = dma.done [#allocation3], 256
    $region25: #{tpu_custom_call.1} parent=1 // pred_fallthru
      _
    %750 = vsyncpa [#allocation3], 1

</llo_original>
